<compile_context>
chip_gen: v7x
topology: tpu7x:2x2x1
jax: 0.10.0
libtpu: 0.0.40
codegen_flags: <defaults>
</compile_context>

<pallas_src>
import functools

import jax
import jax.numpy as jnp
from jax.experimental import pallas as pl
from jax.experimental.pallas import tpu as pltpu

GAMMA = 2.0          # implemented as an explicit square below (gamma == 2)
ALPHA = 0.75
_LOG_CLAMP = -100.0  # torch binary_cross_entropy clamps log values at -100
_LANES = 128
_SUBLANES = 8
_CHUNK = _SUBLANES * _LANES  # 1024 elements = one (8,128) tile


def _round_up(x, m):
    return ((x + m - 1) // m) * m


def _default_num_shards():
    # Two TensorCores per chip on v7x; one on v5e / v6e.
    try:
        kind = jax.devices()[0].device_kind.lower()
        if "v7" in kind or "7x" in kind:
            return 2
    except Exception:
        pass
    return 1


def _focal_loss_kernel(pred_ref, target_ref, out_ref, *,
                       rows_valid, need_mask, binary_targets):
    i = pl.program_id(1)  # inner reduction axis ("arbitrary")

    @pl.when(i == 0)
    def _():
        out_ref[...] = jnp.zeros_like(out_ref)

    # Load in the input's native dtype; do arithmetic in f32 on the VPU.
    p = pred_ref[...].astype(jnp.float32)
    t = target_ref[...].astype(jnp.float32)

    if binary_targets:
        # Hard 0/1 targets: one clamped log, pt taken directly
        # (1 EUP transcendental per element instead of 3).
        psel = jnp.where(t >= 0.5, p, 1.0 - p)
        bce = -jnp.maximum(jnp.log(psel), _LOG_CLAMP)
        pt = psel
    else:
        # binary_cross_entropy(pred, target, reduction='none'):
        #   -(t*log(p) + (1-t)*log(1-p)), with log clamped to >= -100.
        log_p = jnp.maximum(jnp.log(p), _LOG_CLAMP)
        log_1mp = jnp.maximum(jnp.log(1.0 - p), _LOG_CLAMP)
        bce = -(t * log_p + (1.0 - t) * log_1mp)
        pt = jnp.exp(-bce)

    q = 1.0 - pt
    loss = (q * q) * bce  # gamma == 2: explicit square; alpha applied outside

    tm = loss.shape[0]
    if need_mask:
        # Last tile(s) may extend past the valid rows (clamped block index /
        # partial final block): zero their contribution. `rows_valid` is a
        # trace-time constant; select (not multiply) so unspecified OOB data
        # (even NaN) is discarded safely.
        tile_idx = pl.program_id(0) * pl.num_programs(1) + i
        row = jax.lax.broadcasted_iota(jnp.int32, (tm, _LANES), 0)
        loss = jnp.where(tile_idx * tm + row < rows_valid, loss, 0.0)

    # (tm,128) -> (tm//8, 8, 128) and reduce the leading axis: pure vreg adds
    # into the resident (8,128) output block (no XLU, no scratch copy).
    out_ref[0, :, :] += jnp.sum(
        loss.reshape(tm // _SUBLANES, _SUBLANES, _LANES), axis=0)


def _elementwise_focal(p, t):
    """Per-element focal term (without alpha), matching torch semantics."""
    p = p.astype(jnp.float32)
    t = t.astype(jnp.float32)
    log_p = jnp.maximum(jnp.log(p), _LOG_CLAMP)
    log_1mp = jnp.maximum(jnp.log(1.0 - p), _LOG_CLAMP)
    bce = -(t * log_p + (1.0 - t) * log_1mp)
    pt = jnp.exp(-bce)
    return (1.0 - pt) ** 2 * bce


def focal_loss(pred, target, *, tile_rows=8192, num_shards=None,
               binary_targets=False):
    """FocalLoss(gamma=2, alpha=0.75).forward(pred, target) -> scalar mean."""
    assert pred.shape == target.shape
    total = pred.size
    if num_shards is None:
        num_shards = _default_num_shards()
    tile_rows = max(_SUBLANES, _round_up(int(tile_rows), _SUBLANES))

    flat_p = pred.reshape(-1)
    flat_t = target.reshape(-1)

    # Aligned prefix (multiple of 8*128 elements) goes through the kernel; the
    # (<1024-element) tail is reduced in plain JAX so no padding copy is made.
    aligned = (total // _CHUNK) * _CHUNK

    loss_sum = jnp.float32(0.0)

    if aligned:
        p_main = flat_p if aligned == total else flat_p[:aligned]
        t_main = flat_t if aligned == total else flat_t[:aligned]
        rows = aligned // _LANES                      # multiple of 8
        pred2d = p_main.reshape(rows, _LANES)         # lane-dense layout
        targ2d = t_main.reshape(rows, _LANES)

        tm = min(tile_rows, rows)
        total_tiles = pl.cdiv(rows, tm)
        shards = max(1, min(num_shards, total_tiles))
        steps = pl.cdiv(total_tiles, shards)
        need_mask = (shards * steps * tm) != rows

        def in_map(s, i):
            # Clamp so the DMA block index always stays in the array's block
            # grid; over-read / invalid tiles are masked inside the kernel.
            return (jnp.minimum(s * steps + i, total_tiles - 1), 0)

        kernel = functools.partial(
            _focal_loss_kernel, rows_valid=rows, need_mask=need_mask,
            binary_targets=binary_targets)

        partials = pl.pallas_call(
            kernel,
            out_shape=jax.ShapeDtypeStruct((shards, _SUBLANES, _LANES),
                                           jnp.float32),
            grid_spec=pltpu.PrefetchScalarGridSpec(
                num_scalar_prefetch=0,
                grid=(shards, steps),
                in_specs=[
                    pl.BlockSpec((tm, _LANES), in_map),
                    pl.BlockSpec((tm, _LANES), in_map),
                ],
                out_specs=pl.BlockSpec((1, _SUBLANES, _LANES),
                                       lambda s, i: (s, 0, 0)),
            ),
            compiler_params=pltpu.CompilerParams(
                dimension_semantics=("parallel", "arbitrary"),
                vmem_limit_bytes=32 * 1024 * 1024,
            ),
        )(pred2d, targ2d)
        loss_sum = loss_sum + jnp.sum(partials)

    if aligned < total:
        # Tiny unaligned tail (< 1024 elements) reduced in plain JAX.
        loss_sum = loss_sum + jnp.sum(
            _elementwise_focal(flat_p[aligned:], flat_t[aligned:]))

    # alpha and the mean are applied once to the final scalar.
    return loss_sum * jnp.float32(ALPHA) / jnp.float32(total)


def _reference_focal_loss(pred, target):
    p = pred.astype(jnp.float32)
    t = target.astype(jnp.float32)
    log_p = jnp.maximum(jnp.log(p), _LOG_CLAMP)
    log_1mp = jnp.maximum(jnp.log(1.0 - p), _LOG_CLAMP)
    bce = -(t * log_p + (1.0 - t) * log_1mp)
    pt = jnp.exp(-bce)
    return jnp.mean(ALPHA * ((1.0 - pt) ** GAMMA) * bce)


if __name__ == "__main__":
    key = jax.random.PRNGKey(0)
    k1, k2, k3, k4 = jax.random.split(key, 4)

    # Case 1: small binary-classifier shapes (batch=16, 250 probabilities).
    # 16*250 = 4000 elements: 3072 go through the kernel (zero-copy aligned
    # prefix), the 928-element tail is reduced in plain JAX.
    pred1 = jax.nn.sigmoid(jax.random.normal(k1, (16, 250), dtype=jnp.float32))
    targ1 = (jax.random.uniform(k2, (16, 250)) > 0.5).astype(jnp.float32)
    out1 = jax.block_until_ready(focal_loss(pred1, targ1))
    ref1 = _reference_focal_loss(pred1, targ1)
    assert jnp.allclose(out1, ref1, rtol=1e-5, atol=1e-6), (out1, ref1)

    # Case 2: exercises multi-step accumulation, the two-shard "parallel"
    # axis, the clamped-index / masked partial-tile path, and the
    # binary-target single-log fast path.
    pred2 = jax.nn.sigmoid(jax.random.normal(k3, (7, 3000), dtype=jnp.float32))
    targ2 = (jax.random.uniform(k4, (7, 3000)) > 0.5).astype(jnp.float32)
    ref2 = _reference_focal_loss(pred2, targ2)
    out2 = jax.block_until_ready(
        focal_loss(pred2, targ2, tile_rows=48, num_shards=2))
    assert jnp.allclose(out2, ref2, rtol=1e-4, atol=1e-6), (out2, ref2)
    out2f = jax.block_until_ready(
        focal_loss(pred2, targ2, tile_rows=48, num_shards=2,
                   binary_targets=True))
    assert jnp.allclose(out2f, ref2, rtol=1e-4, atol=1e-6), (out2f, ref2)

    print("KERNEL_OK")
</pallas_src>

<mosaic_0001>
module attributes {stable_mosaic.version = 11 : i64} {
  func.func @_focal_loss_kernel(%arg0: i32, %arg1: i32, %arg2: memref<24x128xf32, #tpu.memory_space<vmem>>, %arg3: memref<24x128xf32, #tpu.memory_space<vmem>>, %arg4: memref<1x8x128xf32, #tpu.memory_space<vmem>>) attributes {dimension_semantics = [#tpu.dimension_semantics<parallel>, #tpu.dimension_semantics<arbitrary>], iteration_bounds = array<i64: 1, 1>, scalar_prefetch = 0 : i64, scratch_operands = 0 : i64, tpu.core_type = #tpu.core_type<tc>, window_params = [{transform_indices = @transform_0, window_bounds = array<i64: 24, 128>}, {transform_indices = @transform_1, window_bounds = array<i64: 24, 128>}, {transform_indices = @transform_2, window_bounds = array<i64: 1, 8, 128>}]} {
    %c0_i32 = arith.constant 0 : i32
    %0 = arith.cmpi eq, %arg1, %c0_i32 : i32
    %1 = arith.extui %0 : i1 to i32
    %c0_i32_0 = arith.constant 0 : i32
    %2 = arith.cmpi ne, %1, %c0_i32_0 : i32
    scf.if %2 {
      %cst_17 = arith.constant 0.000000e+00 : f32
      %35 = vector.broadcast %cst_17 : f32 to vector<1x8x128xf32>
      %c0_18 = arith.constant 0 : index
      %c0_19 = arith.constant 0 : index
      %c0_20 = arith.constant 0 : index
      %36 = vector.load %arg4[%c0_18, %c0_19, %c0_20] : memref<1x8x128xf32, #tpu.memory_space<vmem>>, vector<1x8x128xf32>
      tpu.vector_store %arg4[%c0_18, %c0_19, %c0_20], %35 {strides = array<i32>} : memref<1x8x128xf32, #tpu.memory_space<vmem>>, vector<1x8x128xf32>,
    } else {
    }
    %c0 = arith.constant 0 : index
    %c0_1 = arith.constant 0 : index
    %3 = vector.load %arg2[%c0, %c0_1] : memref<24x128xf32, #tpu.memory_space<vmem>>, vector<24x128xf32>
    %c0_2 = arith.constant 0 : index
    %c0_3 = arith.constant 0 : index
    %4 = vector.load %arg3[%c0_2, %c0_3] : memref<24x128xf32, #tpu.memory_space<vmem>>, vector<24x128xf32>
    %5 = math.log %3 : vector<24x128xf32>
    %cst = arith.constant -1.000000e+02 : f32
    %6 = vector.broadcast %cst : f32 to vector<24x128xf32>
    %7 = arith.maximumf %5, %6 : vector<24x128xf32>
    %cst_4 = arith.constant 1.000000e+00 : f32
    %8 = vector.broadcast %cst_4 : f32 to vector<24x128xf32>
    %9 = arith.subf %8, %3 : vector<24x128xf32>
    %10 = math.log %9 : vector<24x128xf32>
    %cst_5 = arith.constant -1.000000e+02 : f32
    %11 = vector.broadcast %cst_5 : f32 to vector<24x128xf32>
    %12 = arith.maximumf %10, %11 : vector<24x128xf32>
    %13 = arith.mulf %4, %7 : vector<24x128xf32>
    %cst_6 = arith.constant 1.000000e+00 : f32
    %14 = vector.broadcast %cst_6 : f32 to vector<24x128xf32>
    %15 = arith.subf %14, %4 : vector<24x128xf32>
    %16 = arith.mulf %15, %12 : vector<24x128xf32>
    %17 = arith.addf %13, %16 : vector<24x128xf32>
    %cst_7 = arith.constant 0.000000e+00 : f32
    %18 = vector.broadcast %cst_7 : f32 to vector<24x128xf32>
    %19 = arith.subf %18, %17 : vector<24x128xf32>
    %cst_8 = arith.constant 0.000000e+00 : f32
    %20 = vector.broadcast %cst_8 : f32 to vector<24x128xf32>
    %21 = arith.subf %20, %19 : vector<24x128xf32>
    %22 = math.exp %21 : vector<24x128xf32>
    %cst_9 = arith.constant 1.000000e+00 : f32
    %23 = vector.broadcast %cst_9 : f32 to vector<24x128xf32>
    %24 = arith.subf %23, %22 : vector<24x128xf32>
    %25 = arith.mulf %24, %24 : vector<24x128xf32>
    %26 = arith.mulf %25, %19 : vector<24x128xf32>
    %c0_10 = arith.constant 0 : index
    %c0_11 = arith.constant 0 : index
    %c0_12 = arith.constant 0 : index
    %27 = vector.load %arg4[%c0_10, %c0_11, %c0_12] : memref<1x8x128xf32, #tpu.memory_space<vmem>>, vector<1x8x128xf32>
    %28 = vector.shape_cast %27 : vector<1x8x128xf32> to vector<8x128xf32>
    %29 = vector.shape_cast %26 : vector<24x128xf32> to vector<3x8x128xf32>
    %cst_13 = arith.constant dense<0.000000e+00> : vector<8x128xf32>
    %30 = vector.multi_reduction <add>, %29, %cst_13 [0] : vector<3x8x128xf32> to vector<8x128xf32>
    %31 = arith.addf %28, %30 : vector<8x128xf32>
    %c0_14 = arith.constant 0 : index
    %c0_15 = arith.constant 0 : index
    %c0_16 = arith.constant 0 : index
    %32 = vector.load %arg4[%c0_14, %c0_15, %c0_16] : memref<1x8x128xf32, #tpu.memory_space<vmem>>, vector<1x8x128xf32>
    %33 = vector.shape_cast %32 : vector<1x8x128xf32> to vector<8x128xf32>
    %34 = vector.shape_cast %31 : vector<8x128xf32> to vector<1x8x128xf32>
    tpu.vector_store %arg4[%c0_14, %c0_15, %c0_16], %34 {strides = array<i32>} : memref<1x8x128xf32, #tpu.memory_space<vmem>>, vector<1x8x128xf32>,
    return
  }
  func.func @transform_0(%arg0: i32, %arg1: i32) -> (i32, i32) {
    %c1_i32 = arith.constant 1 : i32
    %0 = arith.muli %arg0, %c1_i32 : i32
    %1 = arith.addi %0, %arg1 : i32
    %c0_i32 = arith.constant 0 : i32
    %2 = arith.minsi %1, %c0_i32 : i32
    %c0_i32_0 = arith.constant 0 : i32
    %c0_i32_1 = arith.constant 0 : i32
    return %2, %c0_i32_0 : i32, i32
  }
  func.func @transform_1(%arg0: i32, %arg1: i32) -> (i32, i32) {
    %c1_i32 = arith.constant 1 : i32
    %0 = arith.muli %arg0, %c1_i32 : i32
    %1 = arith.addi %0, %arg1 : i32
    %c0_i32 = arith.constant 0 : i32
    %2 = arith.minsi %1, %c0_i32 : i32
    %c0_i32_0 = arith.constant 0 : i32
    %c0_i32_1 = arith.constant 0 : i32
    return %2, %c0_i32_0 : i32, i32
  }
  func.func @transform_2(%arg0: i32, %arg1: i32) -> (i32, i32, i32) {
    %c0_i32 = arith.constant 0 : i32
    %c0_i32_0 = arith.constant 0 : i32
    %c0_i32_1 = arith.constant 0 : i32
    return %arg0, %c0_i32, %c0_i32_0 : i32, i32, i32
  }
}

</mosaic_0001>

<llo_original>
// kernel: tpu_custom_call.1
$region0: #{tpu_custom_call.1}
  #allocation0 [shape = 'u32[]', space=smem, size = 0x4, offset = 0x4, fixed_abs, tag = 'smem constant byte address 0x4 - core index']
  #allocation1 [shape = 'u32[144,128]{1,0:T(1,128)}', space=vmem, size = 0x12000, scoped, tag = 'internal scratch']
  %s0 = inlined_call_operand.hbm [shape: f32[24,128], index: 0, kind: input, shape index: {}]
  %s1 = inlined_call_operand.hbm [shape: f32[24,128], index: 1, kind: input, shape index: {}]
  %s2 = inlined_call_operand.hbm [shape: f32[1,8,128], index: 2, kind: output, shape index: {}]
  %s3 = sld [smem:[#allocation0]]
  $region30: #{tpu_custom_call.1} parent=0
    _
  %s5 = ssub.s32 1, %s3
  %s6 = scalar_select 0, %s5, %s3
  $region1: #{tpu_custom_call.1} parent=0
    #allocation2 [shape = 'u8[12288]{0}', space=vmem, size = 0x3000, scoped, tag = 'input window, operand 0, single buffered']
    #allocation3 [shape = 's32[1]{0}', space=sflag, size = 0x4, scoped, tag = 'scoped memory for tpu_custom_call.1']
    #allocation4 [shape = 's32[1]{0}', space=sflag, size = 0x4, scoped, tag = 'scoped memory for tpu_custom_call.1']
    #allocation5 [shape = 'u8[12288]{0}', space=vmem, size = 0x3000, scoped, tag = 'input window, operand 1, single buffered']
    #allocation6 [shape = 's32[1]{0}', space=sflag, size = 0x4, scoped, tag = 'scoped memory for tpu_custom_call.1']
    #allocation7 [shape = 'u8[4096]{0}', space=vmem, size = 0x1000, scoped, tag = 'output window, operand 0, single buffered']
    %7 = vsyncpa [#allocation3], 0
    %8 = vsyncpa [#allocation6], 0
    %9 = vsyncpa [#allocation4], 0
    // Predicated region
    $region2: #{tpu_custom_call.1} parent=1 // pred_check
      _
    $region3: #{tpu_custom_call.1} parent=1 // pred_check_branch
      %11 = sbr.rel (0) target = $region5
    $region4: #{tpu_custom_call.1} parent=1 // pred_region
      %s12 = sadd.s32 0, 0
      %p13 = scmp.lt.s32.totalorder %s12, 0
      %s14 = scalar_select %p13, %s12, 0
      %s15 = smul.u32 3, %s14
      %s17 = ssub.s32 384, 384
      %18 = vsyncadd [#allocation3], %s17
      %s19 = smul.addr %s15, 128
      %s20 = scalar_lea.hbm %s0, %s19
      %s21 = sshll.u32 [#allocation2], 4
      %s22 = int_to_ptr.vmem [resolvable:$true] %s21
      %27 = dma.hbm_to_vmem [thread:$0]  %s20, 384, %s22, [#allocation3], 128, 128, 8
    $region5: #{tpu_custom_call.1} parent=1 // pred_fallthru
      _
    // Predicated region
    $region6: #{tpu_custom_call.1} parent=1 // pred_check
      _
    $region7: #{tpu_custom_call.1} parent=1 // pred_check_branch
      %29 = sbr.rel (0) target = $region9
    $region8: #{tpu_custom_call.1} parent=1 // pred_region
      %s30 = sadd.s32 0, 0
      %p31 = scmp.lt.s32.totalorder %s30, 0
      %s32 = scalar_select %p31, %s30, 0
      %s33 = smul.u32 3, %s32
      %s35 = ssub.s32 384, 384
      %36 = vsyncadd [#allocation6], %s35
      %s37 = smul.addr %s33, 128
      %s38 = scalar_lea.hbm %s1, %s37
      %s39 = sshll.u32 [#allocation5], 4
      %s40 = int_to_ptr.vmem [resolvable:$true] %s39
      %45 = dma.hbm_to_vmem [thread:$0]  %s38, 384, %s40, [#allocation6], 128, 128, 8
    $region9: #{tpu_custom_call.1} parent=1 // pred_fallthru
      _
    // Predicated region
    $region10: #{tpu_custom_call.1} parent=1 // pred_check
      _
    $region11: #{tpu_custom_call.1} parent=1 // pred_check_branch
      %47 = sbr.rel (0) target = $region13
    $region12: #{tpu_custom_call.1} parent=1 // pred_region
      %48 = dma.done [#allocation3], 384
    $region13: #{tpu_custom_call.1} parent=1 // pred_fallthru
      _
    // Predicated region
    $region14: #{tpu_custom_call.1} parent=1 // pred_check
      _
    $region15: #{tpu_custom_call.1} parent=1 // pred_check_branch
      %50 = sbr.rel (0) target = $region17
    $region16: #{tpu_custom_call.1} parent=1 // pred_region
      %51 = dma.done [#allocation6], 384
    $region17: #{tpu_custom_call.1} parent=1 // pred_fallthru
      _
    %s52 = sadd.s32 0, 0
    %p53 = scmp.lt.s32.totalorder %s52, 0
    %s54 = scalar_select %p53, %s52, 0
    %s55 = smul.u32 3, %s54
    %s56 = sadd.s32 0, 0
    %p57 = scmp.lt.s32.totalorder %s56, 0
    %s58 = scalar_select %p57, %s56, 0
    %s59 = smul.u32 3, %s58
    %p60 = scmp.eq.s32.totalorder 0, 0
    // Predicated region
    $region18: #{tpu_custom_call.1} parent=1 // pred_check
      %p61 = pneg %p60
    $region19: #{tpu_custom_call.1} parent=1 // pred_check_branch
      %63 = sbr.rel (%p61) target = $region21
    $region20: #{tpu_custom_call.1} parent=1 // pred_region
      %64 = vst [vmem:[#allocation7] sm:$0xff] 0.0
    $region21: #{tpu_custom_call.1} parent=1 // pred_fallthru
      _
    %v65 = vld [vmem:[#allocation2] sm:$0xff]
    %v66 = vld [vmem:[#allocation2 + $0x8] sm:$0xff]
    %v67 = vld [vmem:[#allocation2 + $0x10] sm:$0xff]
    %v68 = vld [vmem:[#allocation5] sm:$0xff]
    %v69 = vld [vmem:[#allocation5 + $0x8] sm:$0xff]
    %v70 = vld [vmem:[#allocation5 + $0x10] sm:$0xff]
    %v71 = vlog2.pop %v65
    %v72 = vmul.f32 %v71, 0.6931472
    %v73 = vlog2.pop %v66
    %v74 = vmul.f32 %v73, 0.6931472
    %v75 = vlog2.pop %v67
    %v76 = vmul.f32 %v75, 0.6931472
    %v77 = vmax.f32 %v72, -100.0
    %v78 = vmax.f32 %v74, -100.0
    %v79 = vmax.f32 %v76, -100.0
    %v80 = vsub.f32 1.0, %v65
    %v81 = vsub.f32 1.0, %v66
    %v82 = vsub.f32 1.0, %v67
    %v83 = vlog2.pop %v80
    %v84 = vmul.f32 %v83, 0.6931472
    %v85 = vlog2.pop %v81
    %v86 = vmul.f32 %v85, 0.6931472
    %v87 = vlog2.pop %v82
    %v88 = vmul.f32 %v87, 0.6931472
    %v89 = vmax.f32 %v84, -100.0
    %v90 = vmax.f32 %v86, -100.0
    %v91 = vmax.f32 %v88, -100.0
    %v92 = vmul.f32 %v68, %v77
    %v93 = vmul.f32 %v69, %v78
    %v94 = vmul.f32 %v70, %v79
    %v95 = vsub.f32 1.0, %v68
    %v96 = vsub.f32 1.0, %v69
    %v97 = vsub.f32 1.0, %v70
    %v98 = vmul.f32 %v95, %v89
    %v99 = vmul.f32 %v96, %v90
    %v100 = vmul.f32 %v97, %v91
    %v101 = vadd.f32 %v92, %v98
    %v102 = vadd.f32 %v93, %v99
    %v103 = vadd.f32 %v94, %v100
    %v104 = vsub.f32 0.0, %v101
    %v105 = vsub.f32 0.0, %v102
    %v106 = vsub.f32 0.0, %v103
    %v107 = vsub.f32 0.0, %v104
    %v108 = vsub.f32 0.0, %v105
    %v109 = vsub.f32 0.0, %v106
    %v110 = vmul.f32 %v107, 1.442695
    %v111 = vpow.pop %v110
    %v112 = vmul.f32 %v108, 1.442695
    %v113 = vpow.pop %v112
    %v114 = vmul.f32 %v109, 1.442695
    %v115 = vpow.pop %v114
    %v116 = vsub.f32 1.0, %v111
    %v117 = vsub.f32 1.0, %v113
    %v118 = vsub.f32 1.0, %v115
    %v119 = vmul.f32 %v116, %v116
    %v120 = vmul.f32 %v117, %v117
    %v121 = vmul.f32 %v118, %v118
    %v122 = vmul.f32 %v119, %v104
    %v123 = vmul.f32 %v120, %v105
    %v124 = vmul.f32 %v121, %v106
    %v125 = vld [vmem:[#allocation7] sm:$0xff]
    %v126 = vadd.f32 %v122, %v123
    %v127 = vadd.f32 %v126, %v124
    %v128 = vadd.f32 %v125, %v127
    %129 = vst [vmem:[#allocation7] sm:$0xff] %v128
    // Predicated region
    $region22: #{tpu_custom_call.1} parent=1 // pred_check
      _
    $region23: #{tpu_custom_call.1} parent=1 // pred_check_branch
      %131 = sbr.rel (0) target = $region25
    $region24: #{tpu_custom_call.1} parent=1 // pred_region
      %s133 = ssub.s32 128, 128
      %134 = vsyncadd [#allocation4], %s133
      %s136 = sshll.u32 [#allocation7], 4
      %s137 = int_to_ptr.vmem [resolvable:$true] %s136
      %139 = dma.vmem_to_hbm [thread:$0]  %s137, 128, %s2, [#allocation4]
    $region25: #{tpu_custom_call.1} parent=1 // pred_fallthru
      _
    // Predicated region
    $region26: #{tpu_custom_call.1} parent=1 // pred_check
      _
    $region27: #{tpu_custom_call.1} parent=1 // pred_check_branch
      %141 = sbr.rel (0) target = $region29
    $region28: #{tpu_custom_call.1} parent=1 // pred_region
      %142 = dma.done [#allocation4], 128
    $region29: #{tpu_custom_call.1} parent=1 // pred_fallthru
      _
    %143 = vsyncpa [#allocation3], 1
    %144 = vsyncpa [#allocation6], 1
    %145 = vsyncpa [#allocation4], 1

</llo_original>
